<compile_context>
chip_gen: v5e
topology: v5e:2x2
jax: 0.10.0
libtpu: 0.0.40
codegen_flags: <defaults>
</compile_context>

<pallas_src>
import jax
import jax.numpy as jnp
from jax.experimental import pallas as pl
from jax.experimental.pallas import tpu as pltpu

LANE = 128
SUB = 8


def _round_up(n, m):
    return (n + m - 1) // m * m


def _cdiv(a, b):
    return -(-a // b)


def _mlp_kernel(x_ref, w1_ref, b1_ref, w2_ref, b2_ref, w3_ref, b3_ref, o_ref):
    # fc1 -> ReLU   (f32 MXU matmul, f32 accumulation)
    h1 = jnp.dot(x_ref[...], w1_ref[...], preferred_element_type=jnp.float32)
    h1 = jnp.maximum(h1 + b1_ref[...], 0.0)
    # fc2 -> ReLU
    h2 = jnp.dot(h1, w2_ref[...], preferred_element_type=jnp.float32)
    h2 = jnp.maximum(h2 + b2_ref[...], 0.0)
    # fc3 (logits, no activation)
    out = jnp.dot(h2, w3_ref[...], preferred_element_type=jnp.float32)
    o_ref[...] = (out + b3_ref[...]).astype(o_ref.dtype)


def gnn_model_forward(x, params, *, block_batch=2048):
    """Fused forward pass of GNNModel.

    x: [batch, input_dim] float32
    params: dict with w1[in,hid], b1[1,hid], w2[hid,32], b2[1,32],
            w3[32,out], b3[1,out]   (all float32)
    returns: [batch, output_dim] float32
    """
    w1, b1 = params["w1"], params["b1"]
    w2, b2 = params["w2"], params["b2"]
    w3, b3 = params["w3"], params["b3"]
    batch, in_dim = x.shape
    hid_dim = w1.shape[1]
    mid_dim = w2.shape[1]
    out_dim = w3.shape[1]

    # HBM-visible dims (x features, output logits) are NOT lane-padded: block
    # dim == full array dim is legal, and the DMA then moves only real bytes.
    # VMEM-only dims (hidden / mid) are padded to full 128-lane tiles.
    hid_p = _round_up(hid_dim, LANE)
    mid_p = _round_up(mid_dim, LANE)
    out_p = _round_up(out_dim, SUB)

    def pad2(a, rows, cols):
        return jnp.pad(a, ((0, rows - a.shape[0]), (0, cols - a.shape[1])))

    f32 = jnp.float32
    w1p = pad2(w1, in_dim, hid_p).astype(f32)
    w2p = pad2(w2, hid_p, mid_p).astype(f32)
    w3p = pad2(w3, mid_p, out_p).astype(f32)
    b1p = pad2(b1, 1, hid_p).astype(f32)
    b2p = pad2(b2, 1, mid_p).astype(f32)
    b3p = pad2(b3, 1, out_p).astype(f32)
    # Zero padding keeps the real lanes bit-identical: ReLU(0 + 0) = 0 keeps
    # padded hidden lanes inert through layers 2/3; padded output columns and
    # batch rows are sliced off below.

    # Batch tiling: minimal row padding (multiple of 8), equal-sized tiles to
    # avoid near-full-tile padding waste, and >= 2 tiles for batches >= 512 so
    # both v7x TensorCores get work under dimension_semantics=("parallel",).
    batch8 = _round_up(batch, SUB)
    tb = min(_round_up(block_batch, SUB), batch8)
    n_tiles = _cdiv(batch8, tb)
    if n_tiles == 1 and batch8 >= 512:
        n_tiles = 2
    tb = _round_up(_cdiv(batch8, n_tiles), SUB)
    batch_p = n_tiles * tb

    xp = pad2(x, batch_p, in_dim).astype(f32)

    # Real (unpadded) cost for the scheduler hint.
    flops = 2 * batch * (in_dim * hid_dim + hid_dim * mid_dim + mid_dim * out_dim)
    bytes_accessed = (
        batch * in_dim * 4
        + batch * out_p * 4
        + (w1.size + w2.size + w3.size + b1.size + b2.size + b3.size) * 4
    )

    def resident(shape):
        # Constant index_map -> fetched once, stays VMEM-resident across steps.
        return pl.BlockSpec(shape, lambda i: (0,) * len(shape))

    out_padded = pl.pallas_call(
        _mlp_kernel,
        out_shape=jax.ShapeDtypeStruct((batch_p, out_p), f32),
        grid=(n_tiles,),
        in_specs=[
            pl.BlockSpec((tb, in_dim), lambda i: (i, 0)),   # x: tiled over batch
            resident((in_dim, hid_p)),                      # w1
            resident((1, hid_p)),                           # b1
            resident((hid_p, mid_p)),                       # w2
            resident((1, mid_p)),                           # b2
            resident((mid_p, out_p)),                       # w3
            resident((1, out_p)),                           # b3
        ],
        out_specs=pl.BlockSpec((tb, out_p), lambda i: (i, 0)),
        compiler_params=pltpu.CompilerParams(
            dimension_semantics=("parallel",),
            vmem_limit_bytes=32 << 20,
        ),
        cost_estimate=pl.CostEstimate(
            flops=flops, transcendentals=0, bytes_accessed=bytes_accessed),
    )(xp, w1p, b1p, w2p, b2p, w3p, b3p)

    # Strip batch / column padding.
    return out_padded[:batch, :out_dim]


def init_params(key, input_dim, hidden_dim, output_dim):
    """Deterministic parameter init (uniform, like PyTorch Linear default)."""
    ks = jax.random.split(key, 6)

    def linear(kw, kb, fan_in, fan_out):
        bound = 1.0 / jnp.sqrt(fan_in)
        w = jax.random.uniform(kw, (fan_in, fan_out), jnp.float32, -bound, bound)
        b = jax.random.uniform(kb, (1, fan_out), jnp.float32, -bound, bound)
        return w, b

    w1, b1 = linear(ks[0], ks[1], input_dim, hidden_dim)
    w2, b2 = linear(ks[2], ks[3], hidden_dim, 32)
    w3, b3 = linear(ks[4], ks[5], 32, output_dim)
    return {"w1": w1, "b1": b1, "w2": w2, "b2": b2, "w3": w3, "b3": b3}


def _reference_f32(x, p):
    h1 = jnp.maximum(x @ p["w1"] + p["b1"], 0.0)
    h2 = jnp.maximum(h1 @ p["w2"] + p["b2"], 0.0)
    return h2 @ p["w3"] + p["b3"]


if __name__ == "__main__":
    # Shapes consistent with the module: input_dim from tabular features,
    # hidden=64, intermediate=32, output_dim = number of classes.
    input_dim, hidden_dim, output_dim = 16, 64, 4

    key = jax.random.PRNGKey(0)
    k_x, k_p, k_x2 = jax.random.split(key, 3)
    params = init_params(k_p, input_dim, hidden_dim, output_dim)

    # Small batch (single grid step).
    batch = 8
    x = jax.random.normal(k_x, (batch, input_dim), jnp.float32)
    out = gnn_model_forward(x, params)
    out = jax.block_until_ready(out)
    assert out.shape == (batch, output_dim)
    ref = _reference_f32(x, params)
    assert jnp.allclose(out, ref, atol=5e-3, rtol=5e-3), "mismatch vs f32 reference (small batch)"

    # Larger batch exercising row padding and the multi-tile (megacore) path.
    batch2 = 600
    x2 = jax.random.normal(k_x2, (batch2, input_dim), jnp.float32)
    out2 = gnn_model_forward(x2, params)
    out2 = jax.block_until_ready(out2)
    assert out2.shape == (batch2, output_dim)
    ref2 = _reference_f32(x2, params)
    assert jnp.allclose(out2, ref2, atol=5e-3, rtol=5e-3), "mismatch vs f32 reference (tiled batch)"

    print("KERNEL_OK")
</pallas_src>

<mosaic_0001>
module attributes {stable_mosaic.version = 11 : i64} {
  func.func @_mlp_kernel(%arg0: i32, %arg1: memref<8x16xf32, #tpu.memory_space<vmem>>, %arg2: memref<16x128xf32, #tpu.memory_space<vmem>>, %arg3: memref<1x128xf32, #tpu.memory_space<vmem>>, %arg4: memref<128x128xf32, #tpu.memory_space<vmem>>, %arg5: memref<1x128xf32, #tpu.memory_space<vmem>>, %arg6: memref<128x8xf32, #tpu.memory_space<vmem>>, %arg7: memref<1x8xf32, #tpu.memory_space<vmem>>, %arg8: memref<8x8xf32, #tpu.memory_space<vmem>>) attributes {dimension_semantics = [#tpu.dimension_semantics<parallel>], iteration_bounds = array<i64: 1>, scalar_prefetch = 0 : i64, scratch_operands = 0 : i64, tpu.core_type = #tpu.core_type<tc>, window_params = [{transform_indices = @transform_0, window_bounds = array<i64: 8, 16>}, {pipeline_mode = #tpu.pipeline_mode<synchronous>, transform_indices = @transform_1, window_bounds = array<i64: 16, 128>}, {pipeline_mode = #tpu.pipeline_mode<synchronous>, transform_indices = @transform_2, window_bounds = array<i64: 1, 128>}, {pipeline_mode = #tpu.pipeline_mode<synchronous>, transform_indices = @transform_3, window_bounds = array<i64: 128, 128>}, {pipeline_mode = #tpu.pipeline_mode<synchronous>, transform_indices = @transform_4, window_bounds = array<i64: 1, 128>}, {pipeline_mode = #tpu.pipeline_mode<synchronous>, transform_indices = @transform_5, window_bounds = array<i64: 128, 8>}, {pipeline_mode = #tpu.pipeline_mode<synchronous>, transform_indices = @transform_6, window_bounds = array<i64: 1, 8>}, {transform_indices = @transform_7, window_bounds = array<i64: 8, 8>}]} {
    %c0 = arith.constant 0 : index
    %c0_0 = arith.constant 0 : index
    %0 = vector.load %arg1[%c0, %c0_0] : memref<8x16xf32, #tpu.memory_space<vmem>>, vector<8x16xf32>
    %c0_1 = arith.constant 0 : index
    %c0_2 = arith.constant 0 : index
    %1 = vector.load %arg2[%c0_1, %c0_2] : memref<16x128xf32, #tpu.memory_space<vmem>>, vector<16x128xf32>
    %cst = arith.constant dense<0.000000e+00> : vector<8x128xf32>
    %2 = tpu.matmul %0, %1, %cst {dimension_numbers = #tpu.dot_dimension_numbers<[1], [0], [0], [1], [0, 0, 1, 1], [], []>} : vector<8x16xf32>, vector<16x128xf32>, vector<8x128xf32> -> vector<8x128xf32>
    %c0_3 = arith.constant 0 : index
    %c0_4 = arith.constant 0 : index
    %3 = vector.load %arg3[%c0_3, %c0_4] : memref<1x128xf32, #tpu.memory_space<vmem>>, vector<1x128xf32>
    %4 = vector.broadcast %3 : vector<1x128xf32> to vector<8x128xf32>
    %5 = arith.addf %2, %4 : vector<8x128xf32>
    %cst_5 = arith.constant 0.000000e+00 : f32
    %6 = vector.broadcast %cst_5 : f32 to vector<8x128xf32>
    %7 = arith.maximumf %5, %6 : vector<8x128xf32>
    %c0_6 = arith.constant 0 : index
    %c0_7 = arith.constant 0 : index
    %8 = vector.load %arg4[%c0_6, %c0_7] : memref<128x128xf32, #tpu.memory_space<vmem>>, vector<128x128xf32>
    %cst_8 = arith.constant dense<0.000000e+00> : vector<8x128xf32>
    %9 = tpu.matmul %7, %8, %cst_8 {dimension_numbers = #tpu.dot_dimension_numbers<[1], [0], [0], [1], [0, 0, 1, 1], [], []>} : vector<8x128xf32>, vector<128x128xf32>, vector<8x128xf32> -> vector<8x128xf32>
    %c0_9 = arith.constant 0 : index
    %c0_10 = arith.constant 0 : index
    %10 = vector.load %arg5[%c0_9, %c0_10] : memref<1x128xf32, #tpu.memory_space<vmem>>, vector<1x128xf32>
    %11 = vector.broadcast %10 : vector<1x128xf32> to vector<8x128xf32>
    %12 = arith.addf %9, %11 : vector<8x128xf32>
    %cst_11 = arith.constant 0.000000e+00 : f32
    %13 = vector.broadcast %cst_11 : f32 to vector<8x128xf32>
    %14 = arith.maximumf %12, %13 : vector<8x128xf32>
    %c0_12 = arith.constant 0 : index
    %c0_13 = arith.constant 0 : index
    %15 = vector.load %arg6[%c0_12, %c0_13] : memref<128x8xf32, #tpu.memory_space<vmem>>, vector<128x8xf32>
    %cst_14 = arith.constant dense<0.000000e+00> : vector<8x8xf32>
    %16 = tpu.matmul %14, %15, %cst_14 {dimension_numbers = #tpu.dot_dimension_numbers<[1], [0], [0], [1], [0, 0, 1, 1], [], []>} : vector<8x128xf32>, vector<128x8xf32>, vector<8x8xf32> -> vector<8x8xf32>
    %c0_15 = arith.constant 0 : index
    %c0_16 = arith.constant 0 : index
    %17 = vector.load %arg7[%c0_15, %c0_16] : memref<1x8xf32, #tpu.memory_space<vmem>>, vector<1x8xf32>
    %18 = vector.broadcast %17 : vector<1x8xf32> to vector<8x8xf32>
    %19 = arith.addf %16, %18 : vector<8x8xf32>
    %c0_17 = arith.constant 0 : index
    %c0_18 = arith.constant 0 : index
    %20 = vector.load %arg8[%c0_17, %c0_18] : memref<8x8xf32, #tpu.memory_space<vmem>>, vector<8x8xf32>
    tpu.vector_store %arg8[%c0_17, %c0_18], %19 {strides = array<i32>} : memref<8x8xf32, #tpu.memory_space<vmem>>, vector<8x8xf32>,
    return
  }
  func.func @transform_0(%arg0: i32) -> (i32, i32) {
    %c0_i32 = arith.constant 0 : i32
    %c0_i32_0 = arith.constant 0 : i32
    return %arg0, %c0_i32 : i32, i32
  }
  func.func @transform_1(%arg0: i32) -> (i32, i32) {
    %c0_i32 = arith.constant 0 : i32
    %c0_i32_0 = arith.constant 0 : i32
    %c0_i32_1 = arith.constant 0 : i32
    return %c0_i32, %c0_i32_0 : i32, i32
  }
  func.func @transform_2(%arg0: i32) -> (i32, i32) {
    %c0_i32 = arith.constant 0 : i32
    %c0_i32_0 = arith.constant 0 : i32
    %c0_i32_1 = arith.constant 0 : i32
    return %c0_i32, %c0_i32_0 : i32, i32
  }
  func.func @transform_3(%arg0: i32) -> (i32, i32) {
    %c0_i32 = arith.constant 0 : i32
    %c0_i32_0 = arith.constant 0 : i32
    %c0_i32_1 = arith.constant 0 : i32
    return %c0_i32, %c0_i32_0 : i32, i32
  }
  func.func @transform_4(%arg0: i32) -> (i32, i32) {
    %c0_i32 = arith.constant 0 : i32
    %c0_i32_0 = arith.constant 0 : i32
    %c0_i32_1 = arith.constant 0 : i32
    return %c0_i32, %c0_i32_0 : i32, i32
  }
  func.func @transform_5(%arg0: i32) -> (i32, i32) {
    %c0_i32 = arith.constant 0 : i32
    %c0_i32_0 = arith.constant 0 : i32
    %c0_i32_1 = arith.constant 0 : i32
    return %c0_i32, %c0_i32_0 : i32, i32
  }
  func.func @transform_6(%arg0: i32) -> (i32, i32) {
    %c0_i32 = arith.constant 0 : i32
    %c0_i32_0 = arith.constant 0 : i32
    %c0_i32_1 = arith.constant 0 : i32
    return %c0_i32, %c0_i32_0 : i32, i32
  }
  func.func @transform_7(%arg0: i32) -> (i32, i32) {
    %c0_i32 = arith.constant 0 : i32
    %c0_i32_0 = arith.constant 0 : i32
    return %arg0, %c0_i32 : i32, i32
  }
}

</mosaic_0001>

<llo_original>
// kernel: tpu_custom_call.1
$region0: #{tpu_custom_call.1}
  #allocation0 [shape = 'u32[]', space=smem, size = 0x4, offset = 0x4, fixed_abs, tag = 'smem constant byte address 0x4 - core index']
  #allocation1 [shape = 'u32[72,128]{1,0:T(1,128)}', space=vmem, size = 0x9000, scoped, tag = 'internal scratch']
  %s0 = inlined_call_operand.vmem [shape: f32[8,16], index: 0, kind: input, shape index: {}]
  %s1 = inlined_call_operand.hbm [shape: f32[16,128], index: 1, kind: input, shape index: {}]
  %s2 = inlined_call_operand.vmem [shape: f32[1,128], index: 2, kind: input, shape index: {}]
  %s3 = inlined_call_operand.vmem [shape: f32[128,128], index: 3, kind: input, shape index: {}]
  %s4 = inlined_call_operand.vmem [shape: f32[1,128], index: 4, kind: input, shape index: {}]
  %s5 = inlined_call_operand.vmem [shape: f32[128,8], index: 5, kind: input, shape index: {}]
  %s6 = inlined_call_operand.vmem [shape: f32[1,8], index: 6, kind: input, shape index: {}]
  %s7 = inlined_call_operand.hbm [shape: f32[8,8], index: 7, kind: output, shape index: {}]
  %s8 = sld [smem:[#allocation0]]
  $region42: #{tpu_custom_call.1} parent=0
    _
  %s10 = ssub.s32 1, %s8
  %s11 = scalar_select 0, %s10, %s8
  $region1: #{tpu_custom_call.1} parent=0
    #allocation2 [shape = 'u8[8192]{0}', space=vmem, size = 0x2000, scoped, tag = 'input window, operand 1, single buffered']
    #allocation3 [shape = 's32[1]{0}', space=sflag, size = 0x4, scoped, tag = 'scoped memory for tpu_custom_call.1']
    #allocation4 [shape = 's32[1]{0}', space=sflag, size = 0x4, scoped, tag = 'scoped memory for tpu_custom_call.1']
    #allocation5 [shape = 'u8[4096]{0}', space=vmem, size = 0x1000, scoped, tag = 'output window, operand 0, single buffered']
    %12 = vsyncpa [#allocation3], 0
    %13 = vsyncpa [#allocation4], 0
    // Predicated region
    $region2: #{tpu_custom_call.1} parent=1 // pred_check
      _
    $region3: #{tpu_custom_call.1} parent=1 // pred_check_branch
      %15 = sbr.rel (0) target = $region5
    $region4: #{tpu_custom_call.1} parent=1 // pred_region
      _
    $region5: #{tpu_custom_call.1} parent=1 // pred_fallthru
      _
    // Predicated region
    $region6: #{tpu_custom_call.1} parent=1 // pred_check
      _
    $region7: #{tpu_custom_call.1} parent=1 // pred_check_branch
      %17 = sbr.rel (0) target = $region9
    $region8: #{tpu_custom_call.1} parent=1 // pred_region
      %19 = vsyncadd [#allocation3], 0
      %s20 = sshll.u32 %s1, 4
      %s21 = int_to_ptr.hbm [resolvable:$true] %s20
      %s22 = sshll.u32 [#allocation2], 4
      %s23 = int_to_ptr.vmem [resolvable:$true] %s22
      %28 = dma.hbm_to_vmem [thread:$0]  %s21, 256, %s23, [#allocation3], 128, 128, 8
    $region9: #{tpu_custom_call.1} parent=1 // pred_fallthru
      _
    // Predicated region
    $region10: #{tpu_custom_call.1} parent=1 // pred_check
      _
    $region11: #{tpu_custom_call.1} parent=1 // pred_check_branch
      %30 = sbr.rel (0) target = $region13
    $region12: #{tpu_custom_call.1} parent=1 // pred_region
      _
    $region13: #{tpu_custom_call.1} parent=1 // pred_fallthru
      _
    // Predicated region
    $region14: #{tpu_custom_call.1} parent=1 // pred_check
      _
    $region15: #{tpu_custom_call.1} parent=1 // pred_check_branch
      %32 = sbr.rel (0) target = $region17
    $region16: #{tpu_custom_call.1} parent=1 // pred_region
      _
    $region17: #{tpu_custom_call.1} parent=1 // pred_fallthru
      _
    // Predicated region
    $region18: #{tpu_custom_call.1} parent=1 // pred_check
      _
    $region19: #{tpu_custom_call.1} parent=1 // pred_check_branch
      %34 = sbr.rel (0) target = $region21
    $region20: #{tpu_custom_call.1} parent=1 // pred_region
      _
    $region21: #{tpu_custom_call.1} parent=1 // pred_fallthru
      _
    // Predicated region
    $region22: #{tpu_custom_call.1} parent=1 // pred_check
      _
    $region23: #{tpu_custom_call.1} parent=1 // pred_check_branch
      %36 = sbr.rel (0) target = $region25
    $region24: #{tpu_custom_call.1} parent=1 // pred_region
      _
    $region25: #{tpu_custom_call.1} parent=1 // pred_fallthru
      _
    // Predicated region
    $region26: #{tpu_custom_call.1} parent=1 // pred_check
      _
    $region27: #{tpu_custom_call.1} parent=1 // pred_check_branch
      %38 = sbr.rel (0) target = $region29
    $region28: #{tpu_custom_call.1} parent=1 // pred_region
      _
    $region29: #{tpu_custom_call.1} parent=1 // pred_fallthru
      _
    // Predicated region
    $region30: #{tpu_custom_call.1} parent=1 // pred_check
      _
    $region31: #{tpu_custom_call.1} parent=1 // pred_check_branch
      %40 = sbr.rel (0) target = $region33
    $region32: #{tpu_custom_call.1} parent=1 // pred_region
      %42 = dma.done [#allocation3], 256
    $region33: #{tpu_custom_call.1} parent=1 // pred_fallthru
      _
    %v43 = vld [vmem:[%s0] sm:$0xff]
    %v44 = vld [vmem:[#allocation2] sm:$0xff]
    %v45 = vld [vmem:[#allocation2 + $0x8] sm:$0xff]
    %v46 = vld [vmem:[%s2] sm:$0x1]
    %v48 = vperm.slane %v46, 0
    %vm50 = vcmask 130048
    %v52 = vsel %vm50, %v43, 0
    %54 = vmatpush.msra.mxu0 0.0
    %55 = vmatpush.msra.mxu0 0.0
    %56 = vmatpush.msra.mxu0 0.0
    %57 = vmatpush.msra.mxu0 0.0
    %58 = vmatpush.msra.mxu0 0.0
    %59 = vmatpush.msra.mxu0 0.0
    %60 = vmatpush.msra.mxu0 0.0
    %61 = vmatpush.msra.mxu0 0.0
    %62 = vmatpush.msra.mxu0 0.0
    %63 = vmatpush.msra.mxu0 0.0
    %64 = vmatpush.msra.mxu0 0.0
    %65 = vmatpush.msra.mxu0 0.0
    %66 = vmatpush.msra.mxu0 0.0
    %67 = vmatpush.msra.mxu0 0.0
    %68 = vmatpush.msra.mxu0 %v45
    %69 = vmatpush.msra.mxu0 %v44
    %70 = vmatmul.f32.gmra.mxu0 %v52
    %v71 = vpop.f32.mrf.mxu0
    %v72 = vadd.f32 %v48, %v71
    %73 = vdwg.mxu0
    %v74 = vmax.f32 %v72, 0.0
    %v75 = vld [vmem:[%s3] sm:$0xff]
    %v76 = vld [vmem:[%s3 + $0x8] sm:$0xff]
    %v77 = vld [vmem:[%s3 + $0x10] sm:$0xff]
    %v78 = vld [vmem:[%s3 + $0x18] sm:$0xff]
    %v79 = vld [vmem:[%s3 + $0x20] sm:$0xff]
    %v80 = vld [vmem:[%s3 + $0x28] sm:$0xff]
    %v81 = vld [vmem:[%s3 + $0x30] sm:$0xff]
    %v82 = vld [vmem:[%s3 + $0x38] sm:$0xff]
    %v83 = vld [vmem:[%s3 + $0x40] sm:$0xff]
    %v84 = vld [vmem:[%s3 + $0x48] sm:$0xff]
    %v85 = vld [vmem:[%s3 + $0x50] sm:$0xff]
    %v86 = vld [vmem:[%s3 + $0x58] sm:$0xff]
    %v87 = vld [vmem:[%s3 + $0x60] sm:$0xff]
    %v88 = vld [vmem:[%s3 + $0x68] sm:$0xff]
    %v89 = vld [vmem:[%s3 + $0x70] sm:$0xff]
    %v90 = vld [vmem:[%s3 + $0x78] sm:$0xff]
    %v91 = vld [vmem:[%s4] sm:$0x1]
    %v93 = vperm.slane %v91, 0
    %95 = vmatpush.msra.mxu0 %v90
    %96 = vmatpush.msra.mxu0 %v89
    %97 = vmatpush.msra.mxu0 %v88
    %98 = vmatpush.msra.mxu0 %v87
    %99 = vmatpush.msra.mxu0 %v86
    %100 = vmatpush.msra.mxu0 %v85
    %101 = vmatpush.msra.mxu0 %v84
    %102 = vmatpush.msra.mxu0 %v83
    %103 = vmatpush.msra.mxu0 %v82
    %104 = vmatpush.msra.mxu0 %v81
    %105 = vmatpush.msra.mxu0 %v80
    %106 = vmatpush.msra.mxu0 %v79
    %107 = vmatpush.msra.mxu0 %v78
    %108 = vmatpush.msra.mxu0 %v77
    %109 = vmatpush.msra.mxu0 %v76
    %110 = vmatpush.msra.mxu0 %v75
    %111 = vmatmul.f32.gmra.mxu0 %v74
    %v112 = vpop.f32.mrf.mxu0
    %v113 = vadd.f32 %v93, %v112
    %114 = vdwg.mxu0
    %v115 = vmax.f32 %v113, 0.0
    %v116 = vld [vmem:[%s5] sm:$0xff]
    %v117 = vld [vmem:[%s5 + $0x8] sm:$0xff]
    %v118 = vld [vmem:[%s5 + $0x10] sm:$0xff]
    %v119 = vld [vmem:[%s5 + $0x18] sm:$0xff]
    %v120 = vld [vmem:[%s5 + $0x20] sm:$0xff]
    %v121 = vld [vmem:[%s5 + $0x28] sm:$0xff]
    %v122 = vld [vmem:[%s5 + $0x30] sm:$0xff]
    %v123 = vld [vmem:[%s5 + $0x38] sm:$0xff]
    %v124 = vld [vmem:[%s5 + $0x40] sm:$0xff]
    %v125 = vld [vmem:[%s5 + $0x48] sm:$0xff]
    %v126 = vld [vmem:[%s5 + $0x50] sm:$0xff]
    %v127 = vld [vmem:[%s5 + $0x58] sm:$0xff]
    %v128 = vld [vmem:[%s5 + $0x60] sm:$0xff]
    %v129 = vld [vmem:[%s5 + $0x68] sm:$0xff]
    %v130 = vld [vmem:[%s5 + $0x70] sm:$0xff]
    %v131 = vld [vmem:[%s5 + $0x78] sm:$0xff]
    %v132 = vld [vmem:[%s6] sm:$0x1]
    %v134 = vperm.slane %v132, 0
    %136 = vmatpush.msra.mxu0 %v131
    %137 = vmatpush.msra.mxu0 %v130
    %138 = vmatpush.msra.mxu0 %v129
    %139 = vmatpush.msra.mxu0 %v128
    %140 = vmatpush.msra.mxu0 %v127
    %141 = vmatpush.msra.mxu0 %v126
    %142 = vmatpush.msra.mxu0 %v125
    %143 = vmatpush.msra.mxu0 %v124
    %144 = vmatpush.msra.mxu0 %v123
    %145 = vmatpush.msra.mxu0 %v122
    %146 = vmatpush.msra.mxu0 %v121
    %147 = vmatpush.msra.mxu0 %v120
    %148 = vmatpush.msra.mxu0 %v119
    %149 = vmatpush.msra.mxu0 %v118
    %150 = vmatpush.msra.mxu0 %v117
    %151 = vmatpush.msra.mxu0 %v116
    %152 = vmatmul.f32.gmra.mxu0 %v115
    %v153 = vpop.f32.mrf.mxu0
    %v154 = vadd.f32 %v134, %v153
    %155 = vdwg.mxu0
    %vm156 = vcmask 64512
    %157 = vst.msk [vmem:[#allocation5] sm:$0xff] %vm156, %v154
    // Predicated region
    $region34: #{tpu_custom_call.1} parent=1 // pred_check
      _
    $region35: #{tpu_custom_call.1} parent=1 // pred_check_branch
      %159 = sbr.rel (0) target = $region37
    $region36: #{tpu_custom_call.1} parent=1 // pred_region
      %161 = vsyncadd [#allocation4], 0
      %s163 = sshll.u32 [#allocation5], 4
      %s164 = int_to_ptr.vmem [resolvable:$true] %s163
      %s165 = sshll.u32 %s7, 4
      %s166 = int_to_ptr.hbm [resolvable:$true] %s165
      %168 = dma.vmem_to_hbm [thread:$0]  %s164, 128, %s166, [#allocation4]
    $region37: #{tpu_custom_call.1} parent=1 // pred_fallthru
      _
    // Predicated region
    $region38: #{tpu_custom_call.1} parent=1 // pred_check
      _
    $region39: #{tpu_custom_call.1} parent=1 // pred_check_branch
      %170 = sbr.rel (0) target = $region41
    $region40: #{tpu_custom_call.1} parent=1 // pred_region
      %172 = dma.done [#allocation4], 128
    $region41: #{tpu_custom_call.1} parent=1 // pred_fallthru
      _
    %173 = vsyncpa [#allocation3], 1
    %174 = vsyncpa [#allocation4], 1

</llo_original>
